<compile_context>
chip_gen: v5e
topology: v5e:2x2
jax: 0.10.0
libtpu: 0.0.40
codegen_flags: <defaults>
</compile_context>

<pallas_src>
import functools

import jax
import jax.numpy as jnp
from jax.experimental import pallas as pl
from jax.experimental.pallas import tpu as pltpu


_FUSE_NODES_MAX_ROWS = 512       # keep the node table VMEM-resident below this
_FUSE_NODES_MAX_BYTES = 8 << 20  # ... and below this size
_VMEM_LIMIT_BYTES = 48 << 20     # < v7x's 64 MiB physical VMEM, > 32 MiB default
_TILE_BUDGET_BYTES = 16 << 20    # per-step working-set target (incl. temporaries)


def _round_up(x, m):
    return (x + m - 1) // m * m


def _split_hi_lo_bf16(x_f32):
    # Split f32 table values into bf16 hi + bf16 lo so that a one-hot
    # selection done as two bf16 MXU matmuls reconstructs the value to
    # ~2^-18 relative error (i.e. ~f32-exact), independent of how the MXU
    # treats f32 operands.
    hi = x_f32.astype(jnp.bfloat16)
    lo = (x_f32 - hi.astype(jnp.float32)).astype(jnp.bfloat16)
    return hi, lo


def _onehot_gather(hi, lo, idx_row):
    # hi/lo: (D, N) bf16 split of a transposed table; idx_row: (1, TB) int32.
    # Returns the gathered columns as a (D, TB) f32 tile.
    n = hi.shape[1]
    tb = idx_row.shape[1]
    rows = jax.lax.broadcasted_iota(jnp.int32, (n, tb), 0)
    onehot = jnp.where(rows == idx_row, 1.0, 0.0).astype(jnp.bfloat16)  # (N, TB)
    return (jnp.dot(hi, onehot, preferred_element_type=jnp.float32)
            + jnp.dot(lo, onehot, preferred_element_type=jnp.float32))


def _distmult_fused_kernel(sidx_ref, pidx_ref, oidx_ref, nodes_ref, rel_ref, out_ref):
    # Fully fused gather: nodes_ref (D, V_pad) and rel_ref (D, R_pad) are
    # VMEM-resident; *_idx_ref are (1, TB) int32 blocks; out_ref is (1, TB) f32.
    n_hi, n_lo = _split_hi_lo_bf16(nodes_ref[...].astype(jnp.float32))
    r_hi, r_lo = _split_hi_lo_bf16(rel_ref[...].astype(jnp.float32))
    s = _onehot_gather(n_hi, n_lo, sidx_ref[...])
    o = _onehot_gather(n_hi, n_lo, oidx_ref[...])
    p = _onehot_gather(r_hi, r_lo, pidx_ref[...])
    out_ref[...] = jnp.sum(s * p * o, axis=0, keepdims=True)


def _distmult_stream_kernel(pidx_ref, s_ref, o_ref, rel_ref, out_ref):
    # Streaming path: s_ref/o_ref are pre-gathered (D, TB) embedding streams,
    # rel_ref is the VMEM-resident (D, R_pad) relation table, pidx_ref is a
    # (1, TB) int32 block, out_ref is (1, TB) f32.
    r_hi, r_lo = _split_hi_lo_bf16(rel_ref[...].astype(jnp.float32))
    p = _onehot_gather(r_hi, r_lo, pidx_ref[...])
    s = s_ref[...].astype(jnp.float32)
    o = o_ref[...].astype(jnp.float32)
    out_ref[...] = jnp.sum(s * p * o, axis=0, keepdims=True)


def _pick_tile(T, per_triple_bytes, block_triples):
    tb_cap = max(128, (_TILE_BUDGET_BYTES // per_triple_bytes) // 128 * 128)
    tb = min(block_triples, tb_cap, _round_up(T, 128))
    tb = max(128, (tb // 128) * 128)
    t_pad = _round_up(T, tb)
    # v7x has two TensorCores: make sure the "parallel" triples axis has at
    # least two grid steps whenever T allows it so both cores get work.
    while t_pad // tb < 2 and tb > 128:
        tb = max(128, (tb // 2) // 128 * 128)
        t_pad = _round_up(T, tb)
    return tb, t_pad


@functools.partial(jax.jit, static_argnames=("block_triples",))
def distmult_score(triples, nodes, relations, *, block_triples=16384):
    """Score candidate triples with DistMult.

    triples:   (T, 3) int    -- columns are (s_index, p_index, o_index)
    nodes:     (num_nodes, D) float32 or bfloat16
    relations: (num_rel,   D) float32 or bfloat16
    returns:   (T,) float32 scores
    """
    T = triples.shape[0]
    num_nodes, D = nodes.shape
    num_rel = relations.shape[0]
    itemsize = jnp.dtype(nodes.dtype).itemsize

    s_idx = triples[:, 0].astype(jnp.int32)
    p_idx = triples[:, 1].astype(jnp.int32)
    o_idx = triples[:, 2].astype(jnp.int32)

    # Relation table: tiny -> always VMEM-resident and gathered in-kernel.
    # Pad the (transposed) lane dim to 128 so the one-hot matmul is aligned.
    r_pad = _round_up(num_rel, 128)
    rel_t = jnp.pad(relations.T, ((0, 0), (0, r_pad - num_rel)))      # (D, R_pad)

    fuse_nodes = (num_nodes <= _FUSE_NODES_MAX_ROWS
                  and num_nodes * D * itemsize <= _FUSE_NODES_MAX_BYTES)

    if fuse_nodes:
        v_pad = _round_up(num_nodes, 128)
        nodes_t = jnp.pad(nodes.T, ((0, 0), (0, v_pad - num_nodes)))  # (D, V_pad)
        # Per-triple VMEM footprint: two (V_pad, tb) + one (R_pad, tb) bf16
        # one-hots, a few (D, tb) f32 temporaries, index/output blocks.
        per_triple = 2 * (2 * v_pad + r_pad) + 4 * 6 * D + 48
    else:
        # Pre-transposed table so the XLA gather along axis=1 yields (D, T)
        # directly (no per-call transpose pass over the (T, D) streams).
        nodes_t = nodes.T                                             # (D, num_nodes)
        per_triple = 2 * 2 * D * itemsize + 2 * r_pad + 4 * 5 * D + 48

    tb, t_pad = _pick_tile(T, per_triple, block_triples)
    pad = t_pad - T
    if pad:
        # Pad only the cheap (T,) index vectors (index 0 is always valid);
        # the padded scores are sliced off at the end.
        s_idx = jnp.pad(s_idx, (0, pad))
        p_idx = jnp.pad(p_idx, (0, pad))
        o_idx = jnp.pad(o_idx, (0, pad))
    s_idx2 = s_idx.reshape(1, t_pad)
    p_idx2 = p_idx.reshape(1, t_pad)
    o_idx2 = o_idx.reshape(1, t_pad)

    grid = (t_pad // tb,)
    idx_spec = pl.BlockSpec((1, tb), lambda i: (0, i))
    out_spec = pl.BlockSpec((1, tb), lambda i: (0, i))
    rel_spec = pl.BlockSpec((D, r_pad), lambda i: (0, 0))             # resident
    cparams = pltpu.CompilerParams(
        dimension_semantics=("parallel",),
        vmem_limit_bytes=_VMEM_LIMIT_BYTES,
    )
    out_shape = jax.ShapeDtypeStruct((1, t_pad), jnp.float32)

    if fuse_nodes:
        nodes_spec = pl.BlockSpec((D, nodes_t.shape[1]), lambda i: (0, 0))
        scores = pl.pallas_call(
            _distmult_fused_kernel,
            out_shape=out_shape,
            grid_spec=pltpu.PrefetchScalarGridSpec(
                num_scalar_prefetch=0,
                grid=grid,
                in_specs=[idx_spec, idx_spec, idx_spec, nodes_spec, rel_spec],
                out_specs=out_spec,
            ),
            compiler_params=cparams,
        )(s_idx2, p_idx2, o_idx2, nodes_t, rel_t)
    else:
        # TODO(synk): for very large node tables, replace this XLA gather with
        # an in-kernel DMA gather (scalar-prefetched indices + per-row async
        # copies from HBM) to remove the remaining (T, D) intermediates.
        s_t = jnp.take(nodes_t, s_idx, axis=1)    # (D, t_pad), already transposed
        o_t = jnp.take(nodes_t, o_idx, axis=1)
        emb_spec = pl.BlockSpec((D, tb), lambda i: (0, i))
        scores = pl.pallas_call(
            _distmult_stream_kernel,
            out_shape=out_shape,
            grid_spec=pltpu.PrefetchScalarGridSpec(
                num_scalar_prefetch=0,
                grid=grid,
                in_specs=[idx_spec, emb_spec, emb_spec, rel_spec],
                out_specs=out_spec,
            ),
            compiler_params=cparams,
        )(p_idx2, s_t, o_t, rel_t)

    # TODO(synk): b_init biases (sbias/pbias/obias) are None in the default
    # config and therefore not added; they would be a trivial per-triple add.
    return scores[0, :T]


def reference_score(triples, nodes, relations):
    s = nodes[triples[:, 0], :]
    p = relations[triples[:, 1], :]
    o = nodes[triples[:, 2], :]
    return (s * p * o).sum(axis=-1)


if __name__ == "__main__":
    key = jax.random.PRNGKey(0)
    k_rel, k_nodes, k_s, k_p, k_o, k_rest = jax.random.split(key, 6)

    # Module config (small): indim = num_rel, outdim = embedding dim D,
    # w_init='standard-normal', b_init=None (no biases).
    num_nodes, num_rel, dim, num_triples = 64, 8, 32, 50
    relations = jax.random.normal(k_rel, (num_rel, dim), dtype=jnp.float32)
    nodes = jax.random.normal(k_nodes, (num_nodes, dim), dtype=jnp.float32)
    s_idx = jax.random.randint(k_s, (num_triples,), 0, num_nodes, dtype=jnp.int32)
    p_idx = jax.random.randint(k_p, (num_triples,), 0, num_rel, dtype=jnp.int32)
    o_idx = jax.random.randint(k_o, (num_triples,), 0, num_nodes, dtype=jnp.int32)
    triples = jnp.stack([s_idx, p_idx, o_idx], axis=1)

    # Path 1: small node table -> fully fused in-kernel gather.
    scores = jax.block_until_ready(distmult_score(triples, nodes, relations))
    ref = reference_score(triples, nodes, relations)
    assert scores.shape == (num_triples,)
    err = float(jnp.max(jnp.abs(scores - ref)))
    assert jnp.allclose(scores, ref, atol=1e-3, rtol=1e-3), \
        f"fused path max abs err = {err}"

    # Path 2: larger node table -> streamed s/o embeddings, in-kernel relation
    # gather, >= 2 grid steps (exercises the v7x two-TensorCore split).
    k_n2, k_s2, k_p2, k_o2 = jax.random.split(k_rest, 4)
    num_nodes2, num_triples2 = 1000, 300
    nodes2 = jax.random.normal(k_n2, (num_nodes2, dim), dtype=jnp.float32)
    s2 = jax.random.randint(k_s2, (num_triples2,), 0, num_nodes2, dtype=jnp.int32)
    p2 = jax.random.randint(k_p2, (num_triples2,), 0, num_rel, dtype=jnp.int32)
    o2 = jax.random.randint(k_o2, (num_triples2,), 0, num_nodes2, dtype=jnp.int32)
    triples2 = jnp.stack([s2, p2, o2], axis=1)

    scores2 = jax.block_until_ready(distmult_score(triples2, nodes2, relations))
    ref2 = reference_score(triples2, nodes2, relations)
    assert scores2.shape == (num_triples2,)
    err2 = float(jnp.max(jnp.abs(scores2 - ref2)))
    assert jnp.allclose(scores2, ref2, atol=1e-3, rtol=1e-3), \
        f"stream path max abs err = {err2}"

    print("KERNEL_OK")
</pallas_src>

<mosaic_0001>
module attributes {stable_mosaic.version = 11 : i64} {
  func.func @_distmult_fused_kernel(%arg0: i32, %arg1: memref<1x128xi32, #tpu.memory_space<vmem>>, %arg2: memref<1x128xi32, #tpu.memory_space<vmem>>, %arg3: memref<1x128xi32, #tpu.memory_space<vmem>>, %arg4: memref<32x128xf32, #tpu.memory_space<vmem>>, %arg5: memref<32x128xf32, #tpu.memory_space<vmem>>, %arg6: memref<1x128xf32, #tpu.memory_space<vmem>>) attributes {dimension_semantics = [#tpu.dimension_semantics<parallel>], iteration_bounds = array<i64: 1>, scalar_prefetch = 0 : i64, scratch_operands = 0 : i64, tpu.core_type = #tpu.core_type<tc>, window_params = [{transform_indices = @transform_0, window_bounds = array<i64: 1, 128>}, {transform_indices = @transform_1, window_bounds = array<i64: 1, 128>}, {transform_indices = @transform_2, window_bounds = array<i64: 1, 128>}, {pipeline_mode = #tpu.pipeline_mode<synchronous>, transform_indices = @transform_3, window_bounds = array<i64: 32, 128>}, {pipeline_mode = #tpu.pipeline_mode<synchronous>, transform_indices = @transform_4, window_bounds = array<i64: 32, 128>}, {transform_indices = @transform_5, window_bounds = array<i64: 1, 128>}]} {
    %c0 = arith.constant 0 : index
    %c0_0 = arith.constant 0 : index
    %0 = vector.load %arg4[%c0, %c0_0] : memref<32x128xf32, #tpu.memory_space<vmem>>, vector<32x128xf32>
    %1 = arith.truncf %0 : vector<32x128xf32> to vector<32x128xbf16>
    %2 = arith.extf %1 : vector<32x128xbf16> to vector<32x128xf32>
    %3 = arith.subf %0, %2 : vector<32x128xf32>
    %4 = arith.truncf %3 : vector<32x128xf32> to vector<32x128xbf16>
    %c0_1 = arith.constant 0 : index
    %c0_2 = arith.constant 0 : index
    %5 = vector.load %arg5[%c0_1, %c0_2] : memref<32x128xf32, #tpu.memory_space<vmem>>, vector<32x128xf32>
    %6 = arith.truncf %5 : vector<32x128xf32> to vector<32x128xbf16>
    %7 = arith.extf %6 : vector<32x128xbf16> to vector<32x128xf32>
    %8 = arith.subf %5, %7 : vector<32x128xf32>
    %9 = arith.truncf %8 : vector<32x128xf32> to vector<32x128xbf16>
    %c0_3 = arith.constant 0 : index
    %c0_4 = arith.constant 0 : index
    %10 = vector.load %arg1[%c0_3, %c0_4] : memref<1x128xi32, #tpu.memory_space<vmem>>, vector<1x128xi32>
    %11 = tpu.iota {dimensions = array<i32: 0>} : vector<128x128xi32>
    %12 = vector.broadcast %10 : vector<1x128xi32> to vector<128x128xi32>
    %13 = arith.cmpi eq, %11, %12 : vector<128x128xi32>
    %cst = arith.constant 1.000000e+00 : f32
    %cst_5 = arith.constant 0.000000e+00 : f32
    %14 = vector.broadcast %cst : f32 to vector<128x128xf32>
    %15 = vector.broadcast %cst_5 : f32 to vector<128x128xf32>
    %16 = arith.select %13, %14, %15 : vector<128x128xi1>, vector<128x128xf32>
    %17 = arith.truncf %16 : vector<128x128xf32> to vector<128x128xbf16>
    %cst_6 = arith.constant dense<0.000000e+00> : vector<32x128xf32>
    %18 = tpu.matmul %1, %17, %cst_6 {dimension_numbers = #tpu.dot_dimension_numbers<[1], [0], [0], [1], [0, 0, 1, 1], [], []>} : vector<32x128xbf16>, vector<128x128xbf16>, vector<32x128xf32> -> vector<32x128xf32>
    %cst_7 = arith.constant dense<0.000000e+00> : vector<32x128xf32>
    %19 = tpu.matmul %4, %17, %cst_7 {dimension_numbers = #tpu.dot_dimension_numbers<[1], [0], [0], [1], [0, 0, 1, 1], [], []>} : vector<32x128xbf16>, vector<128x128xbf16>, vector<32x128xf32> -> vector<32x128xf32>
    %20 = arith.addf %18, %19 : vector<32x128xf32>
    %c0_8 = arith.constant 0 : index
    %c0_9 = arith.constant 0 : index
    %21 = vector.load %arg3[%c0_8, %c0_9] : memref<1x128xi32, #tpu.memory_space<vmem>>, vector<1x128xi32>
    %22 = tpu.iota {dimensions = array<i32: 0>} : vector<128x128xi32>
    %23 = vector.broadcast %21 : vector<1x128xi32> to vector<128x128xi32>
    %24 = arith.cmpi eq, %22, %23 : vector<128x128xi32>
    %cst_10 = arith.constant 1.000000e+00 : f32
    %cst_11 = arith.constant 0.000000e+00 : f32
    %25 = vector.broadcast %cst_10 : f32 to vector<128x128xf32>
    %26 = vector.broadcast %cst_11 : f32 to vector<128x128xf32>
    %27 = arith.select %24, %25, %26 : vector<128x128xi1>, vector<128x128xf32>
    %28 = arith.truncf %27 : vector<128x128xf32> to vector<128x128xbf16>
    %cst_12 = arith.constant dense<0.000000e+00> : vector<32x128xf32>
    %29 = tpu.matmul %1, %28, %cst_12 {dimension_numbers = #tpu.dot_dimension_numbers<[1], [0], [0], [1], [0, 0, 1, 1], [], []>} : vector<32x128xbf16>, vector<128x128xbf16>, vector<32x128xf32> -> vector<32x128xf32>
    %cst_13 = arith.constant dense<0.000000e+00> : vector<32x128xf32>
    %30 = tpu.matmul %4, %28, %cst_13 {dimension_numbers = #tpu.dot_dimension_numbers<[1], [0], [0], [1], [0, 0, 1, 1], [], []>} : vector<32x128xbf16>, vector<128x128xbf16>, vector<32x128xf32> -> vector<32x128xf32>
    %31 = arith.addf %29, %30 : vector<32x128xf32>
    %c0_14 = arith.constant 0 : index
    %c0_15 = arith.constant 0 : index
    %32 = vector.load %arg2[%c0_14, %c0_15] : memref<1x128xi32, #tpu.memory_space<vmem>>, vector<1x128xi32>
    %33 = tpu.iota {dimensions = array<i32: 0>} : vector<128x128xi32>
    %34 = vector.broadcast %32 : vector<1x128xi32> to vector<128x128xi32>
    %35 = arith.cmpi eq, %33, %34 : vector<128x128xi32>
    %cst_16 = arith.constant 1.000000e+00 : f32
    %cst_17 = arith.constant 0.000000e+00 : f32
    %36 = vector.broadcast %cst_16 : f32 to vector<128x128xf32>
    %37 = vector.broadcast %cst_17 : f32 to vector<128x128xf32>
    %38 = arith.select %35, %36, %37 : vector<128x128xi1>, vector<128x128xf32>
    %39 = arith.truncf %38 : vector<128x128xf32> to vector<128x128xbf16>
    %cst_18 = arith.constant dense<0.000000e+00> : vector<32x128xf32>
    %40 = tpu.matmul %6, %39, %cst_18 {dimension_numbers = #tpu.dot_dimension_numbers<[1], [0], [0], [1], [0, 0, 1, 1], [], []>} : vector<32x128xbf16>, vector<128x128xbf16>, vector<32x128xf32> -> vector<32x128xf32>
    %cst_19 = arith.constant dense<0.000000e+00> : vector<32x128xf32>
    %41 = tpu.matmul %9, %39, %cst_19 {dimension_numbers = #tpu.dot_dimension_numbers<[1], [0], [0], [1], [0, 0, 1, 1], [], []>} : vector<32x128xbf16>, vector<128x128xbf16>, vector<32x128xf32> -> vector<32x128xf32>
    %42 = arith.addf %40, %41 : vector<32x128xf32>
    %43 = arith.mulf %20, %42 : vector<32x128xf32>
    %44 = arith.mulf %43, %31 : vector<32x128xf32>
    %cst_20 = arith.constant dense<0.000000e+00> : vector<128xf32>
    %45 = vector.multi_reduction <add>, %44, %cst_20 [0] : vector<32x128xf32> to vector<128xf32>
    %46 = vector.shape_cast %45 : vector<128xf32> to vector<1x128xf32>
    %c0_21 = arith.constant 0 : index
    %c0_22 = arith.constant 0 : index
    %47 = vector.load %arg6[%c0_21, %c0_22] : memref<1x128xf32, #tpu.memory_space<vmem>>, vector<1x128xf32>
    tpu.vector_store %arg6[%c0_21, %c0_22], %46 {strides = array<i32>} : memref<1x128xf32, #tpu.memory_space<vmem>>, vector<1x128xf32>,
    return
  }
  func.func @transform_0(%arg0: i32) -> (i32, i32) {
    %c0_i32 = arith.constant 0 : i32
    %c0_i32_0 = arith.constant 0 : i32
    return %c0_i32, %arg0 : i32, i32
  }
  func.func @transform_1(%arg0: i32) -> (i32, i32) {
    %c0_i32 = arith.constant 0 : i32
    %c0_i32_0 = arith.constant 0 : i32
    return %c0_i32, %arg0 : i32, i32
  }
  func.func @transform_2(%arg0: i32) -> (i32, i32) {
    %c0_i32 = arith.constant 0 : i32
    %c0_i32_0 = arith.constant 0 : i32
    return %c0_i32, %arg0 : i32, i32
  }
  func.func @transform_3(%arg0: i32) -> (i32, i32) {
    %c0_i32 = arith.constant 0 : i32
    %c0_i32_0 = arith.constant 0 : i32
    %c0_i32_1 = arith.constant 0 : i32
    return %c0_i32, %c0_i32_0 : i32, i32
  }
  func.func @transform_4(%arg0: i32) -> (i32, i32) {
    %c0_i32 = arith.constant 0 : i32
    %c0_i32_0 = arith.constant 0 : i32
    %c0_i32_1 = arith.constant 0 : i32
    return %c0_i32, %c0_i32_0 : i32, i32
  }
  func.func @transform_5(%arg0: i32) -> (i32, i32) {
    %c0_i32 = arith.constant 0 : i32
    %c0_i32_0 = arith.constant 0 : i32
    return %c0_i32, %arg0 : i32, i32
  }
}

</mosaic_0001>

<llo_original>
// kernel: distmult_score.1
$region0: #{distmult_score.1}
  #allocation0 [shape = 'u32[]', space=smem, size = 0x4, offset = 0x4, fixed_abs, tag = 'smem constant byte address 0x4 - core index']
  #allocation1 [shape = 'u32[72,128]{1,0:T(1,128)}', space=vmem, size = 0x9000, scoped, tag = 'internal scratch']
  %s0 = inlined_call_operand.vmem [shape: s32[1,128], index: 0, kind: input, shape index: {}]
  %s1 = inlined_call_operand.vmem [shape: s32[1,128], index: 1, kind: input, shape index: {}]
  %s2 = inlined_call_operand.vmem [shape: s32[1,128], index: 2, kind: input, shape index: {}]
  %s3 = inlined_call_operand.vmem [shape: f32[32,128], index: 3, kind: input, shape index: {}]
  %s4 = inlined_call_operand.vmem [shape: f32[32,128], index: 4, kind: input, shape index: {}]
  %s5 = inlined_call_operand.vmem [shape: f32[1,128], index: 5, kind: output, shape index: {}]
  %s6 = sld [smem:[#allocation0]]
  $region30: #{distmult_score.1} parent=0
    _
  %s8 = ssub.s32 1, %s6
  %s9 = scalar_select 0, %s8, %s6
  // Predicated region
  $region2: #{distmult_score.1} parent=0 // pred_check
    _
  $region3: #{distmult_score.1} parent=0 // pred_check_branch
    %11 = sbr.rel (0) target = $region5
  $region4: #{distmult_score.1} parent=0 // pred_region
    _
  $region5: #{distmult_score.1} parent=0 // pred_fallthru
    _
  // Predicated region
  $region6: #{distmult_score.1} parent=0 // pred_check
    _
  $region7: #{distmult_score.1} parent=0 // pred_check_branch
    %13 = sbr.rel (0) target = $region9
  $region8: #{distmult_score.1} parent=0 // pred_region
    _
  $region9: #{distmult_score.1} parent=0 // pred_fallthru
    _
  // Predicated region
  $region10: #{distmult_score.1} parent=0 // pred_check
    _
  $region11: #{distmult_score.1} parent=0 // pred_check_branch
    %15 = sbr.rel (0) target = $region13
  $region12: #{distmult_score.1} parent=0 // pred_region
    _
  $region13: #{distmult_score.1} parent=0 // pred_fallthru
    _
  // Predicated region
  $region14: #{distmult_score.1} parent=0 // pred_check
    _
  $region15: #{distmult_score.1} parent=0 // pred_check_branch
    %17 = sbr.rel (0) target = $region17
  $region16: #{distmult_score.1} parent=0 // pred_region
    _
  $region17: #{distmult_score.1} parent=0 // pred_fallthru
    _
  // Predicated region
  $region18: #{distmult_score.1} parent=0 // pred_check
    _
  $region19: #{distmult_score.1} parent=0 // pred_check_branch
    %19 = sbr.rel (0) target = $region21
  $region20: #{distmult_score.1} parent=0 // pred_region
    _
  $region21: #{distmult_score.1} parent=0 // pred_fallthru
    _
  %v20 = vld [vmem:[%s3] sm:$0xff]
  %v21 = vld [vmem:[%s3 + $0x8] sm:$0xff]
  %v22 = vld [vmem:[%s3 + $0x10] sm:$0xff]
  %v23 = vld [vmem:[%s3 + $0x18] sm:$0xff]
  %v24 = vpack.c.bf16 %v20, %v20
  %v25 = vpack.c.bf16 %v21, %v21
  %v26 = vpack.c.bf16 %v22, %v22
  %v27 = vpack.c.bf16 %v23, %v23
  %v28 = vunpack.c.l.bf16 %v24
  %v29 = vunpack.c.l.bf16 %v25
  %v30 = vunpack.c.l.bf16 %v26
  %v31 = vunpack.c.l.bf16 %v27
  %v32 = vsub.f32 %v20, %v28
  %v33 = vsub.f32 %v21, %v29
  %v34 = vsub.f32 %v22, %v30
  %v35 = vsub.f32 %v23, %v31
  %v36 = vpack.c.bf16 %v33, %v32
  %v37 = vpack.c.bf16 %v35, %v34
  %v38 = vld [vmem:[%s4] sm:$0xff]
  %v39 = vld [vmem:[%s4 + $0x8] sm:$0xff]
  %v40 = vld [vmem:[%s4 + $0x10] sm:$0xff]
  %v41 = vld [vmem:[%s4 + $0x18] sm:$0xff]
  %v42 = vpack.c.bf16 %v38, %v38
  %v43 = vpack.c.bf16 %v39, %v39
  %v44 = vpack.c.bf16 %v40, %v40
  %v45 = vpack.c.bf16 %v41, %v41
  %v46 = vunpack.c.l.bf16 %v42
  %v47 = vunpack.c.l.bf16 %v43
  %v48 = vunpack.c.l.bf16 %v44
  %v49 = vunpack.c.l.bf16 %v45
  %v50 = vsub.f32 %v38, %v46
  %v51 = vsub.f32 %v39, %v47
  %v52 = vsub.f32 %v40, %v48
  %v53 = vsub.f32 %v41, %v49
  %v54 = vpack.c.bf16 %v51, %v50
  %v55 = vpack.c.bf16 %v53, %v52
  %v56 = vld [vmem:[%s0] sm:$0x1]
  %v57 = vlaneseq
  %v58 = vshrl.u32 %v57, 7
  %v59 = vadd.s32 %v58, 8
  %v60 = vadd.s32 %v58, 16
  %v61 = vadd.s32 %v58, 24
  %v62 = vadd.s32 %v58, 32
  %v63 = vadd.s32 %v58, 40
  %v64 = vadd.s32 %v58, 48
  %v65 = vadd.s32 %v58, 56
  %v66 = vadd.s32 %v58, 64
  %v67 = vadd.s32 %v58, 72
  %v68 = vadd.s32 %v58, 80
  %v69 = vadd.s32 %v58, 88
  %v70 = vadd.s32 %v58, 96
  %v71 = vadd.s32 %v58, 104
  %v72 = vadd.s32 %v58, 112
  %v73 = vadd.s32 %v58, 120
  %v74 = vperm.slane %v56, 0
  %vm75 = vcmp.eq.s32.totalorder %v58, %v74
  %vm76 = vcmp.eq.s32.totalorder %v59, %v74
  %vm77 = vcmp.eq.s32.totalorder %v60, %v74
  %vm78 = vcmp.eq.s32.totalorder %v61, %v74
  %vm79 = vcmp.eq.s32.totalorder %v62, %v74
  %vm80 = vcmp.eq.s32.totalorder %v63, %v74
  %vm81 = vcmp.eq.s32.totalorder %v64, %v74
  %vm82 = vcmp.eq.s32.totalorder %v65, %v74
  %vm83 = vcmp.eq.s32.totalorder %v66, %v74
  %vm84 = vcmp.eq.s32.totalorder %v67, %v74
  %vm85 = vcmp.eq.s32.totalorder %v68, %v74
  %vm86 = vcmp.eq.s32.totalorder %v69, %v74
  %vm87 = vcmp.eq.s32.totalorder %v70, %v74
  %vm88 = vcmp.eq.s32.totalorder %v71, %v74
  %vm89 = vcmp.eq.s32.totalorder %v72, %v74
  %vm90 = vcmp.eq.s32.totalorder %v73, %v74
  %v91 = vsel %vm75, 1.0, 0.0
  %v92 = vsel %vm76, 1.0, 0.0
  %v93 = vsel %vm77, 1.0, 0.0
  %v94 = vsel %vm78, 1.0, 0.0
  %v95 = vsel %vm79, 1.0, 0.0
  %v96 = vsel %vm80, 1.0, 0.0
  %v97 = vsel %vm81, 1.0, 0.0
  %v98 = vsel %vm82, 1.0, 0.0
  %v99 = vsel %vm83, 1.0, 0.0
  %v100 = vsel %vm84, 1.0, 0.0
  %v101 = vsel %vm85, 1.0, 0.0
  %v102 = vsel %vm86, 1.0, 0.0
  %v103 = vsel %vm87, 1.0, 0.0
  %v104 = vsel %vm88, 1.0, 0.0
  %v105 = vsel %vm89, 1.0, 0.0
  %v106 = vsel %vm90, 1.0, 0.0
  %v107 = vpack.c.bf16 %v92, %v91
  %v108 = vpack.c.bf16 %v94, %v93
  %v109 = vpack.c.bf16 %v96, %v95
  %v110 = vpack.c.bf16 %v98, %v97
  %v111 = vpack.c.bf16 %v100, %v99
  %v112 = vpack.c.bf16 %v102, %v101
  %v113 = vpack.c.bf16 %v104, %v103
  %v114 = vpack.c.bf16 %v106, %v105
  %115 = vmatpush.bf16.msra.mxu0 %v114
  %116 = vmatpush.bf16.msra.mxu0 %v113
  %117 = vmatpush.bf16.msra.mxu0 %v112
  %118 = vmatpush.bf16.msra.mxu0 %v111
  %119 = vmatpush.bf16.msra.mxu0 %v110
  %120 = vmatpush.bf16.msra.mxu0 %v109
  %121 = vmatpush.bf16.msra.mxu0 %v108
  %122 = vmatpush.bf16.msra.mxu0 %v107
  %123 = vmatmul.bf16.gmra.mxu0 %v36
  %v124 = vpop.f32.mrf.mxu0
  %v125 = vadd.f32 0.0, %v124
  %v126 = vpop.f32.mrf.mxu0
  %v127 = vadd.f32 0.0, %v126
  %128 = vmatmul.bf16.gmra.mxu0 %v37
  %v129 = vpop.f32.mrf.mxu0
  %v130 = vadd.f32 0.0, %v129
  %v131 = vpop.f32.mrf.mxu0
  %v132 = vadd.f32 0.0, %v131
  %133 = vdwg.mxu0
  %v138 = vunpack.c.l.b16 %v24
  %v139 = vunpack.c.l.b16 %v25
  %v140 = vunpack.c.l.b16 %v26
  %v141 = vunpack.c.l.b16 %v27
  %v142 = vpack.c.b16 %v139, %v138
  %v143 = vpack.c.b16 %v141, %v140
  %146 = vmatpush.bf16.msra.mxu0 %v114
  %147 = vmatpush.bf16.msra.mxu0 %v113
  %148 = vmatpush.bf16.msra.mxu0 %v112
  %149 = vmatpush.bf16.msra.mxu0 %v111
  %150 = vmatpush.bf16.msra.mxu0 %v110
  %151 = vmatpush.bf16.msra.mxu0 %v109
  %152 = vmatpush.bf16.msra.mxu0 %v108
  %153 = vmatpush.bf16.msra.mxu0 %v107
  %154 = vmatmul.bf16.gmra.mxu0 %v142
  %v155 = vpop.f32.mrf.mxu0
  %v156 = vadd.f32 %v125, %v155
  %v157 = vpop.f32.mrf.mxu0
  %v158 = vadd.f32 %v127, %v157
  %159 = vmatmul.bf16.gmra.mxu0 %v143
  %v160 = vpop.f32.mrf.mxu0
  %v161 = vadd.f32 %v130, %v160
  %v162 = vpop.f32.mrf.mxu0
  %v163 = vadd.f32 %v132, %v162
  %164 = vdwg.mxu0
  %v165 = vld [vmem:[%s2] sm:$0x1]
  %v166 = vperm.slane %v165, 0
  %vm167 = vcmp.eq.s32.totalorder %v58, %v166
  %vm168 = vcmp.eq.s32.totalorder %v59, %v166
  %vm169 = vcmp.eq.s32.totalorder %v60, %v166
  %vm170 = vcmp.eq.s32.totalorder %v61, %v166
  %vm171 = vcmp.eq.s32.totalorder %v62, %v166
  %vm172 = vcmp.eq.s32.totalorder %v63, %v166
  %vm173 = vcmp.eq.s32.totalorder %v64, %v166
  %vm174 = vcmp.eq.s32.totalorder %v65, %v166
  %vm175 = vcmp.eq.s32.totalorder %v66, %v166
  %vm176 = vcmp.eq.s32.totalorder %v67, %v166
  %vm177 = vcmp.eq.s32.totalorder %v68, %v166
  %vm178 = vcmp.eq.s32.totalorder %v69, %v166
  %vm179 = vcmp.eq.s32.totalorder %v70, %v166
  %vm180 = vcmp.eq.s32.totalorder %v71, %v166
  %vm181 = vcmp.eq.s32.totalorder %v72, %v166
  %vm182 = vcmp.eq.s32.totalorder %v73, %v166
  %v183 = vsel %vm167, 1.0, 0.0
  %v184 = vsel %vm168, 1.0, 0.0
  %v185 = vsel %vm169, 1.0, 0.0
  %v186 = vsel %vm170, 1.0, 0.0
  %v187 = vsel %vm171, 1.0, 0.0
  %v188 = vsel %vm172, 1.0, 0.0
  %v189 = vsel %vm173, 1.0, 0.0
  %v190 = vsel %vm174, 1.0, 0.0
  %v191 = vsel %vm175, 1.0, 0.0
  %v192 = vsel %vm176, 1.0, 0.0
  %v193 = vsel %vm177, 1.0, 0.0
  %v194 = vsel %vm178, 1.0, 0.0
  %v195 = vsel %vm179, 1.0, 0.0
  %v196 = vsel %vm180, 1.0, 0.0
  %v197 = vsel %vm181, 1.0, 0.0
  %v198 = vsel %vm182, 1.0, 0.0
  %v199 = vpack.c.bf16 %v184, %v183
  %v200 = vpack.c.bf16 %v186, %v185
  %v201 = vpack.c.bf16 %v188, %v187
  %v202 = vpack.c.bf16 %v190, %v189
  %v203 = vpack.c.bf16 %v192, %v191
  %v204 = vpack.c.bf16 %v194, %v193
  %v205 = vpack.c.bf16 %v196, %v195
  %v206 = vpack.c.bf16 %v198, %v197
  %207 = vmatpush.bf16.msra.mxu0 %v206
  %208 = vmatpush.bf16.msra.mxu0 %v205
  %209 = vmatpush.bf16.msra.mxu0 %v204
  %210 = vmatpush.bf16.msra.mxu0 %v203
  %211 = vmatpush.bf16.msra.mxu0 %v202
  %212 = vmatpush.bf16.msra.mxu0 %v201
  %213 = vmatpush.bf16.msra.mxu0 %v200
  %214 = vmatpush.bf16.msra.mxu0 %v199
  %215 = vmatmul.bf16.gmra.mxu0 %v36
  %v216 = vpop.f32.mrf.mxu0
  %v217 = vadd.f32 0.0, %v216
  %v218 = vpop.f32.mrf.mxu0
  %v219 = vadd.f32 0.0, %v218
  %220 = vmatmul.bf16.gmra.mxu0 %v37
  %v221 = vpop.f32.mrf.mxu0
  %v222 = vadd.f32 0.0, %v221
  %v223 = vpop.f32.mrf.mxu0
  %v224 = vadd.f32 0.0, %v223
  %225 = vdwg.mxu0
  %226 = vmatpush.bf16.msra.mxu0 %v206
  %227 = vmatpush.bf16.msra.mxu0 %v205
  %228 = vmatpush.bf16.msra.mxu0 %v204
  %229 = vmatpush.bf16.msra.mxu0 %v203
  %230 = vmatpush.bf16.msra.mxu0 %v202
  %231 = vmatpush.bf16.msra.mxu0 %v201
  %232 = vmatpush.bf16.msra.mxu0 %v200
  %233 = vmatpush.bf16.msra.mxu0 %v199
  %234 = vmatmul.bf16.gmra.mxu0 %v142
  %v235 = vpop.f32.mrf.mxu0
  %v236 = vadd.f32 %v217, %v235
  %v237 = vpop.f32.mrf.mxu0
  %v238 = vadd.f32 %v219, %v237
  %239 = vmatmul.bf16.gmra.mxu0 %v143
  %v240 = vpop.f32.mrf.mxu0
  %v241 = vadd.f32 %v222, %v240
  %v242 = vpop.f32.mrf.mxu0
  %v243 = vadd.f32 %v224, %v242
  %244 = vdwg.mxu0
  %v245 = vld [vmem:[%s1] sm:$0x1]
  %v246 = vperm.slane %v245, 0
  %vm247 = vcmp.eq.s32.totalorder %v58, %v246
  %vm248 = vcmp.eq.s32.totalorder %v59, %v246
  %vm249 = vcmp.eq.s32.totalorder %v60, %v246
  %vm250 = vcmp.eq.s32.totalorder %v61, %v246
  %vm251 = vcmp.eq.s32.totalorder %v62, %v246
  %vm252 = vcmp.eq.s32.totalorder %v63, %v246
  %vm253 = vcmp.eq.s32.totalorder %v64, %v246
  %vm254 = vcmp.eq.s32.totalorder %v65, %v246
  %vm255 = vcmp.eq.s32.totalorder %v66, %v246
  %vm256 = vcmp.eq.s32.totalorder %v67, %v246
  %vm257 = vcmp.eq.s32.totalorder %v68, %v246
  %vm258 = vcmp.eq.s32.totalorder %v69, %v246
  %vm259 = vcmp.eq.s32.totalorder %v70, %v246
  %vm260 = vcmp.eq.s32.totalorder %v71, %v246
  %vm261 = vcmp.eq.s32.totalorder %v72, %v246
  %vm262 = vcmp.eq.s32.totalorder %v73, %v246
  %v263 = vsel %vm247, 1.0, 0.0
  %v264 = vsel %vm248, 1.0, 0.0
  %v265 = vsel %vm249, 1.0, 0.0
  %v266 = vsel %vm250, 1.0, 0.0
  %v267 = vsel %vm251, 1.0, 0.0
  %v268 = vsel %vm252, 1.0, 0.0
  %v269 = vsel %vm253, 1.0, 0.0
  %v270 = vsel %vm254, 1.0, 0.0
  %v271 = vsel %vm255, 1.0, 0.0
  %v272 = vsel %vm256, 1.0, 0.0
  %v273 = vsel %vm257, 1.0, 0.0
  %v274 = vsel %vm258, 1.0, 0.0
  %v275 = vsel %vm259, 1.0, 0.0
  %v276 = vsel %vm260, 1.0, 0.0
  %v277 = vsel %vm261, 1.0, 0.0
  %v278 = vsel %vm262, 1.0, 0.0
  %v279 = vpack.c.bf16 %v264, %v263
  %v280 = vpack.c.bf16 %v266, %v265
  %v281 = vpack.c.bf16 %v268, %v267
  %v282 = vpack.c.bf16 %v270, %v269
  %v283 = vpack.c.bf16 %v272, %v271
  %v284 = vpack.c.bf16 %v274, %v273
  %v285 = vpack.c.bf16 %v276, %v275
  %v286 = vpack.c.bf16 %v278, %v277
  %287 = vmatpush.bf16.msra.mxu0 %v286
  %288 = vmatpush.bf16.msra.mxu0 %v285
  %289 = vmatpush.bf16.msra.mxu0 %v284
  %290 = vmatpush.bf16.msra.mxu0 %v283
  %291 = vmatpush.bf16.msra.mxu0 %v282
  %292 = vmatpush.bf16.msra.mxu0 %v281
  %293 = vmatpush.bf16.msra.mxu0 %v280
  %294 = vmatpush.bf16.msra.mxu0 %v279
  %295 = vmatmul.bf16.gmra.mxu0 %v54
  %v296 = vpop.f32.mrf.mxu0
  %v297 = vadd.f32 0.0, %v296
  %v298 = vpop.f32.mrf.mxu0
  %v299 = vadd.f32 0.0, %v298
  %300 = vmatmul.bf16.gmra.mxu0 %v55
  %v301 = vpop.f32.mrf.mxu0
  %v302 = vadd.f32 0.0, %v301
  %v303 = vpop.f32.mrf.mxu0
  %v304 = vadd.f32 0.0, %v303
  %305 = vdwg.mxu0
  %v310 = vunpack.c.l.b16 %v42
  %v311 = vunpack.c.l.b16 %v43
  %v312 = vunpack.c.l.b16 %v44
  %v313 = vunpack.c.l.b16 %v45
  %v314 = vpack.c.b16 %v311, %v310
  %v315 = vpack.c.b16 %v313, %v312
  %318 = vmatpush.bf16.msra.mxu0 %v286
  %319 = vmatpush.bf16.msra.mxu0 %v285
  %320 = vmatpush.bf16.msra.mxu0 %v284
  %321 = vmatpush.bf16.msra.mxu0 %v283
  %322 = vmatpush.bf16.msra.mxu0 %v282
  %323 = vmatpush.bf16.msra.mxu0 %v281
  %324 = vmatpush.bf16.msra.mxu0 %v280
  %325 = vmatpush.bf16.msra.mxu0 %v279
  %326 = vmatmul.bf16.gmra.mxu0 %v314
  %v327 = vpop.f32.mrf.mxu0
  %v328 = vadd.f32 %v297, %v327
  %v329 = vpop.f32.mrf.mxu0
  %v330 = vadd.f32 %v299, %v329
  %331 = vmatmul.bf16.gmra.mxu0 %v315
  %v332 = vpop.f32.mrf.mxu0
  %v333 = vadd.f32 %v302, %v332
  %v334 = vpop.f32.mrf.mxu0
  %v335 = vadd.f32 %v304, %v334
  %336 = vdwg.mxu0
  %v337 = vmul.f32 %v156, %v328
  %v338 = vmul.f32 %v158, %v330
  %v339 = vmul.f32 %v161, %v333
  %v340 = vmul.f32 %v163, %v335
  %v341 = vmul.f32 %v337, %v236
  %v342 = vmul.f32 %v338, %v238
  %v343 = vmul.f32 %v339, %v241
  %v344 = vmul.f32 %v340, %v243
  %v345 = vadd.f32 %v341, %v342
  %v346 = vadd.f32 %v345, %v343
  %v347 = vadd.f32 %v346, %v344
  %v348 = vrot.slane %v347, 4
  %v349 = vadd.f32 %v347, %v348
  %v350 = vrot.slane %v349, 2
  %v351 = vadd.f32 %v349, %v350
  %v352 = vrot.slane %v351, 1
  %v353 = vadd.f32 %v351, %v352
  %354 = vst [vmem:[%s5] sm:$0x1] %v353
  // Predicated region
  $region22: #{distmult_score.1} parent=0 // pred_check
    _
  $region23: #{distmult_score.1} parent=0 // pred_check_branch
    %356 = sbr.rel (0) target = $region25
  $region24: #{distmult_score.1} parent=0 // pred_region
    _
  $region25: #{distmult_score.1} parent=0 // pred_fallthru
    _
  // Predicated region
  $region26: #{distmult_score.1} parent=0 // pred_check
    _
  $region27: #{distmult_score.1} parent=0 // pred_check_branch
    %358 = sbr.rel (0) target = $region29
  $region28: #{distmult_score.1} parent=0 // pred_region
    _
  $region29: #{distmult_score.1} parent=0 // pred_fallthru
    _

</llo_original>
